<compile_context>
chip_gen: v7x
topology: tpu7x:2x2x1
jax: 0.10.0
libtpu: 0.0.40
codegen_flags: <defaults>
</compile_context>

<pallas_src>
import math
import numpy as np
import jax
import jax.numpy as jnp
from jax import lax
from jax.experimental import pallas as pl
from jax.experimental.pallas import tpu as pltpu


def log_rampup(current, rampup_length):
    """ramps.log_rampup (CCT / mean-teacher convention)."""
    if rampup_length == 0:
        return 1.0
    current = min(max(float(current), 0.0), float(rampup_length))
    return float(1.0 - math.exp(-5.0 * current / rampup_length))


def _largest_divisor_tile(size, unit, cap):
    """Largest multiple of `unit` that divides `size`, capped at `cap` (else `size`)."""
    best = None
    t = unit
    limit = min(size, cap)
    while t <= limit:
        if size % t == 0:
            best = t
        t += unit
    return best if best is not None else size


# ---------------------------------------------------------------------------
# Kernel 1: elementwise hot path (softmax over C, channel gather, BCE).
# Outputs: masked_prob (= gathered prob where target != ignore, else +inf) and loss.
# ---------------------------------------------------------------------------
def _make_elementwise_kernel(ignore_index, num_classes):
    ign_f = float(ignore_index)
    ign_i = int(ignore_index)

    def kernel(pred_ref, tgt_ref, mprob_ref, loss_ref):
        x = pred_ref[...]          # (1, C, T) float32, values in (0, 1)
        t = tgt_ref[...]           # (1, C, T) float32

        # softmax over channel axis (dim=1 in the PyTorch module)
        m = jnp.max(x, axis=1, keepdims=True)
        e = jnp.exp(x - m)
        s = jnp.sum(e, axis=1, keepdims=True)
        # approx=True would move the divide fully onto the EUP (~free) but perturbs
        # probs by ~1e-3 relative, which can flip borderline threshold comparisons.
        sm = e * pl.reciprocal(s, approx=False)

        # tmp_target = int64(target); tmp_target[tmp_target == ignore_index] = 0
        t_int = t.astype(jnp.int32)                       # trunc toward zero (matches torch)
        t_int = jnp.where(t_int == ign_i, 0, t_int)

        # prob = softmax.gather(1, tmp_target)  -> chained selects over C (C is small;
        # stays on the VPU — an MXU one-hot matmul would waste the systolic array).
        prob = jnp.broadcast_to(sm[:, 0:1, :], t.shape)
        for k in range(1, num_classes):
            prob = jnp.where(t_int == k, sm[:, k:k + 1, :], prob)

        # F.binary_cross_entropy(predict, target, reduction='none'); torch clamps log at -100
        log_p = jnp.maximum(jnp.log(x), -100.0)
        log_1mp = jnp.maximum(jnp.log(1.0 - x), -100.0)
        loss = -(t * log_p + (1.0 - t) * log_1mp)

        keep = (t != ign_f)                               # mask on the ORIGINAL float target
        mprob_ref[...] = jnp.where(keep, prob, jnp.inf)
        loss_ref[...] = loss

    return kernel


# ---------------------------------------------------------------------------
# Kernel 2: tiled selection + reduction:
#   sum_r loss_flat[r] * [cprob[r] < threshold]   and the count.
# cprob is +inf for every compact index >= M (and threshold is always finite), so no
# explicit `r < M` test is needed.
# ---------------------------------------------------------------------------
def _select_reduce_kernel(loss_ref, cprob_ref, thr_ref, sum_ref, cnt_ref):
    @pl.when(pl.program_id(0) == 0)
    def _():
        sum_ref[...] = jnp.zeros_like(sum_ref)
        cnt_ref[...] = jnp.zeros_like(cnt_ref)

    thr = thr_ref[0, 0]                       # SMEM scalar
    sel = (cprob_ref[...] < thr).astype(jnp.float32)
    sum_ref[0, 0] += jnp.sum(loss_ref[...] * sel)
    cnt_ref[0, 0] += jnp.sum(sel)


class ABCELossPallas:
    """Annealed-Bootstrapped CE loss with the hot path in Pallas TPU kernels."""

    def __init__(self, iter_per_epoch, epochs, num_classes, weight=None,
                 reduction='mean', thresh=0.7, min_kept=1, ramp_type='log_rampup'):
        # `weight` is stored but (like the PyTorch forward) never used in forward.
        self.weight = None if weight is None else jnp.asarray(weight, jnp.float32)
        self.reduction = reduction
        self.thresh = thresh
        self.min_kept = min_kept
        self.ramp_type = ramp_type
        if ramp_type is not None:
            self.rampup_func = log_rampup
            self.iter_per_epoch = iter_per_epoch
            self.num_classes = num_classes
            self.start = 1.0 / num_classes
            self.end = 0.9
            self.total_num_iters = (epochs - 0.6 * epochs) * iter_per_epoch

    def threshold(self, curr_iter, epoch):
        cur_total_iter = self.iter_per_epoch * epoch + curr_iter
        current_rampup = self.rampup_func(cur_total_iter, self.total_num_iters)
        return current_rampup * (self.end - self.start) + self.start

    def __call__(self, predict, target, ignore_index, curr_iter, epoch):
        N, C, H, W = predict.shape
        HW = H * W
        total = N * C * HW
        assert HW % 128 == 0 and total % 128 == 0, "spatial size must align to 128 lanes"

        pred3 = predict.reshape(N, C, HW).astype(jnp.float32)
        tgt3 = target.reshape(N, C, HW).astype(jnp.float32)

        # ---- kernel 1: tiled over (batch, spatial) ---------------------------------------
        HW_TILE = _largest_divisor_tile(HW, 128, 8192)
        n_s = HW // HW_TILE
        spec = pl.BlockSpec((1, C, HW_TILE), lambda n, s: (n, 0, s))
        mprob, loss = pl.pallas_call(
            _make_elementwise_kernel(ignore_index, C),
            out_shape=(
                jax.ShapeDtypeStruct((N, C, HW), jnp.float32),
                jax.ShapeDtypeStruct((N, C, HW), jnp.float32),
            ),
            grid_spec=pltpu.PrefetchScalarGridSpec(
                num_scalar_prefetch=0,
                grid=(N, n_s),
                in_specs=[spec, spec],
                out_specs=[spec, spec],
            ),
            compiler_params=pltpu.CompilerParams(
                dimension_semantics=("parallel", "parallel"),
                vmem_limit_bytes=32 * 1024 * 1024),
        )(pred3, tgt3)

        # ---- glue: threshold ramp + rank compaction --------------------------------------
        mprob_flat = mprob.reshape(total)       # +inf where target == ignore_index
        loss_flat = loss.reshape(total)
        mask_b = jnp.isfinite(mprob_flat)       # softmax probs are always finite
        mask_i = mask_b.astype(jnp.int32)
        ranks = jnp.cumsum(mask_i) - mask_i     # compact index of each kept element

        # TODO(synk): data-dependent compaction (cumsum + scatter reproducing the original
        # `loss_flat[sort_indices]` indexing) stays in XLA glue — no clean static-shape
        # Pallas TPU scatter equivalent; profile this at scale, it likely dominates.
        scatter_idx = jnp.where(mask_b, ranks, total)          # drop non-kept positions
        cprob = jnp.full((total,), jnp.inf, jnp.float32).at[scatter_idx].set(
            mprob_flat, mode='drop')

        if self.ramp_type is not None:
            thresh = self.threshold(curr_iter=curr_iter, epoch=epoch)
        else:
            thresh = self.thresh
        min_masked = jnp.min(mprob_flat)        # +inf if nothing is kept
        min_threshold = jnp.where(jnp.isfinite(min_masked), min_masked, jnp.float32(0.0))
        threshold = jnp.maximum(min_threshold, jnp.float32(thresh))

        # ---- kernel 2: tiled select + reduce ---------------------------------------------
        rows = total // 128
        pad_rows = (-rows) % 8
        if pad_rows:  # rare: make the sublane dim a multiple of 8 (pad is inert: loss=0, prob=+inf)
            loss_flat = jnp.concatenate(
                [loss_flat, jnp.zeros((pad_rows * 128,), jnp.float32)])
            cprob = jnp.concatenate(
                [cprob, jnp.full((pad_rows * 128,), jnp.inf, jnp.float32)])
            rows += pad_rows

        TILE_R = _largest_divisor_tile(rows, 8, 2048)
        grid_r = rows // TILE_R
        loss2d = loss_flat.reshape(rows, 128)
        cprob2d = cprob.reshape(rows, 128)
        thr_arr = jnp.reshape(threshold.astype(jnp.float32), (1, 1))

        data_spec = pl.BlockSpec((TILE_R, 128), lambda r: (r, 0))
        acc_spec = pl.BlockSpec((1, 1), lambda r: (0, 0))
        s, cnt = pl.pallas_call(
            _select_reduce_kernel,
            out_shape=(jax.ShapeDtypeStruct((1, 1), jnp.float32),
                       jax.ShapeDtypeStruct((1, 1), jnp.float32)),
            grid_spec=pltpu.PrefetchScalarGridSpec(
                num_scalar_prefetch=0,
                grid=(grid_r,),
                in_specs=[data_spec, data_spec,
                          pl.BlockSpec(memory_space=pltpu.MemorySpace.SMEM)],
                out_specs=[acc_spec, acc_spec],
            ),
            compiler_params=pltpu.CompilerParams(
                dimension_semantics=("arbitrary",),
                vmem_limit_bytes=32 * 1024 * 1024),
        )(loss2d, cprob2d, thr_arr)
        s = s[0, 0]
        cnt = cnt[0, 0]

        if self.reduction == 'sum':
            return s
        elif self.reduction == 'mean':
            # mean of selected losses; if nothing selected, return the (zero) sum
            return jnp.where(cnt > 0, s / jnp.maximum(cnt, 1.0), s)
        else:
            raise NotImplementedError('Reduction Error!')


# ---------------------------------------------------------------------------
# NumPy reference replicating the original PyTorch algorithm (incl. its indexing)
# ---------------------------------------------------------------------------
def _reference_numpy(predict, target, ignore_index, thresh, reduction):
    p = predict.astype(np.float32)
    t = target.astype(np.float32)
    e = np.exp(p - p.max(axis=1, keepdims=True))
    sm = e / e.sum(axis=1, keepdims=True)
    tmp = t.astype(np.int64)
    tmp[tmp == ignore_index] = 0
    prob = np.take_along_axis(sm, tmp, axis=1)
    mask = t.reshape(-1) != ignore_index
    masked_prob = prob.reshape(-1)[mask]
    order = np.argsort(masked_prob)
    sort_prob = masked_prob[order]
    min_threshold = sort_prob.min() if sort_prob.size > 0 else 0.0
    threshold = max(min_threshold, thresh)
    log_p = np.maximum(np.log(p), -100.0)
    log_1mp = np.maximum(np.log(1.0 - p), -100.0)
    loss_flat = (-(t * log_p + (1.0 - t) * log_1mp)).reshape(-1)
    sort_loss = loss_flat[order]                 # reproduces original indexing exactly
    select = sort_loss[sort_prob < threshold]
    if reduction == 'sum' or select.size == 0:
        return select.sum()
    return select.mean()


if __name__ == "__main__":
    N, C, H, W = 2, 4, 16, 16
    key = jax.random.PRNGKey(0)
    k1, k2, k3 = jax.random.split(key, 3)

    # predict must be a probability map (BCE requires values in (0,1))
    predict = jax.nn.sigmoid(jax.random.normal(k1, (N, C, H, W), jnp.float32))
    target = jax.random.bernoulli(k2, 0.5, (N, C, H, W)).astype(jnp.float32)
    ignore_index = 255
    ign = jax.random.bernoulli(k3, 0.1, (N, C, H, W))
    target = jnp.where(ign, float(ignore_index), target)

    loss_mod = ABCELossPallas(iter_per_epoch=100, epochs=10, num_classes=C,
                              reduction='mean', thresh=0.7, min_kept=1,
                              ramp_type='log_rampup')

    # case A: early training -> low annealed threshold -> partial selection
    out_a = jax.block_until_ready(loss_mod(predict, target, ignore_index, 0, 0))
    ref_a = _reference_numpy(np.asarray(predict), np.asarray(target), ignore_index,
                             loss_mod.threshold(0, 0), loss_mod.reduction)
    assert np.allclose(float(out_a), float(ref_a), rtol=1e-3, atol=1e-2), (float(out_a), float(ref_a))

    # case B: late training -> high threshold -> everything selected
    out_b = jax.block_until_ready(loss_mod(predict, target, ignore_index, 50, 3))
    ref_b = _reference_numpy(np.asarray(predict), np.asarray(target), ignore_index,
                             loss_mod.threshold(50, 3), loss_mod.reduction)
    assert np.allclose(float(out_b), float(ref_b), rtol=1e-4, atol=1e-5), (float(out_b), float(ref_b))

    print("KERNEL_OK")
</pallas_src>

<mosaic_0001>
module attributes {stable_mosaic.version = 11 : i64} {
  func.func @kernel(%arg0: i32, %arg1: i32, %arg2: memref<1x4x256xf32, #tpu.memory_space<vmem>>, %arg3: memref<1x4x256xf32, #tpu.memory_space<vmem>>, %arg4: memref<1x4x256xf32, #tpu.memory_space<vmem>>, %arg5: memref<1x4x256xf32, #tpu.memory_space<vmem>>) attributes {dimension_semantics = [#tpu.dimension_semantics<parallel>, #tpu.dimension_semantics<parallel>], iteration_bounds = array<i64: 2, 1>, scalar_prefetch = 0 : i64, scratch_operands = 0 : i64, tpu.core_type = #tpu.core_type<tc>, window_params = [{transform_indices = @transform_0, window_bounds = array<i64: 1, 4, 256>}, {transform_indices = @transform_1, window_bounds = array<i64: 1, 4, 256>}, {transform_indices = @transform_2, window_bounds = array<i64: 1, 4, 256>}, {transform_indices = @transform_3, window_bounds = array<i64: 1, 4, 256>}]} {
    %c0 = arith.constant 0 : index
    %c0_0 = arith.constant 0 : index
    %c0_1 = arith.constant 0 : index
    %0 = vector.load %arg2[%c0, %c0_0, %c0_1] : memref<1x4x256xf32, #tpu.memory_space<vmem>>, vector<1x4x256xf32>
    %c0_2 = arith.constant 0 : index
    %c0_3 = arith.constant 0 : index
    %c0_4 = arith.constant 0 : index
    %1 = vector.load %arg3[%c0_2, %c0_3, %c0_4] : memref<1x4x256xf32, #tpu.memory_space<vmem>>, vector<1x4x256xf32>
    %cst = arith.constant dense<0xFF800000> : vector<1x256xf32>
    %2 = vector.multi_reduction <maximumf>, %0, %cst [1] : vector<1x4x256xf32> to vector<1x256xf32>
    %3 = vector.shape_cast %2 : vector<1x256xf32> to vector<1x1x256xf32>
    %4 = vector.broadcast %3 : vector<1x1x256xf32> to vector<1x4x256xf32>
    %5 = arith.subf %0, %4 : vector<1x4x256xf32>
    %6 = math.exp %5 : vector<1x4x256xf32>
    %cst_5 = arith.constant dense<0.000000e+00> : vector<1x256xf32>
    %7 = vector.multi_reduction <add>, %6, %cst_5 [1] : vector<1x4x256xf32> to vector<1x256xf32>
    %8 = vector.shape_cast %7 : vector<1x256xf32> to vector<1x1x256xf32>
    %9 = tpu.reciprocal %8 : vector<1x1x256xf32> -> vector<1x1x256xf32>
    %10 = vector.broadcast %9 : vector<1x1x256xf32> to vector<1x4x256xf32>
    %11 = arith.mulf %6, %10 : vector<1x4x256xf32>
    %12 = arith.fptosi %1 : vector<1x4x256xf32> to vector<1x4x256xi32>
    %c255_i32 = arith.constant 255 : i32
    %13 = vector.broadcast %c255_i32 : i32 to vector<1x4x256xi32>
    %14 = arith.cmpi eq, %12, %13 : vector<1x4x256xi32>
    %c0_i32 = arith.constant 0 : i32
    %15 = vector.broadcast %c0_i32 : i32 to vector<1x4x256xi32>
    %16 = arith.select %14, %15, %12 : vector<1x4x256xi1>, vector<1x4x256xi32>
    %17 = vector.extract_strided_slice %11 {offsets = [0, 0, 0], sizes = [1, 1, 256], strides = [1, 1, 1]} : vector<1x4x256xf32> to vector<1x1x256xf32>
    %18 = vector.shape_cast %17 : vector<1x1x256xf32> to vector<1x1x256xf32>
    %19 = vector.broadcast %18 : vector<1x1x256xf32> to vector<1x4x256xf32>
    %c1_i32 = arith.constant 1 : i32
    %20 = vector.broadcast %c1_i32 : i32 to vector<1x4x256xi32>
    %21 = arith.cmpi eq, %16, %20 : vector<1x4x256xi32>
    %22 = vector.extract_strided_slice %11 {offsets = [0, 1, 0], sizes = [1, 1, 256], strides = [1, 1, 1]} : vector<1x4x256xf32> to vector<1x1x256xf32>
    %23 = vector.shape_cast %22 : vector<1x1x256xf32> to vector<1x1x256xf32>
    %24 = vector.broadcast %23 : vector<1x1x256xf32> to vector<1x4x256xf32>
    %25 = arith.select %21, %24, %19 : vector<1x4x256xi1>, vector<1x4x256xf32>
    %c2_i32 = arith.constant 2 : i32
    %26 = vector.broadcast %c2_i32 : i32 to vector<1x4x256xi32>
    %27 = arith.cmpi eq, %16, %26 : vector<1x4x256xi32>
    %28 = vector.extract_strided_slice %11 {offsets = [0, 2, 0], sizes = [1, 1, 256], strides = [1, 1, 1]} : vector<1x4x256xf32> to vector<1x1x256xf32>
    %29 = vector.shape_cast %28 : vector<1x1x256xf32> to vector<1x1x256xf32>
    %30 = vector.broadcast %29 : vector<1x1x256xf32> to vector<1x4x256xf32>
    %31 = arith.select %27, %30, %25 : vector<1x4x256xi1>, vector<1x4x256xf32>
    %c3_i32 = arith.constant 3 : i32
    %32 = vector.broadcast %c3_i32 : i32 to vector<1x4x256xi32>
    %33 = arith.cmpi eq, %16, %32 : vector<1x4x256xi32>
    %34 = vector.extract_strided_slice %11 {offsets = [0, 3, 0], sizes = [1, 1, 256], strides = [1, 1, 1]} : vector<1x4x256xf32> to vector<1x1x256xf32>
    %35 = vector.shape_cast %34 : vector<1x1x256xf32> to vector<1x1x256xf32>
    %36 = vector.broadcast %35 : vector<1x1x256xf32> to vector<1x4x256xf32>
    %37 = arith.select %33, %36, %31 : vector<1x4x256xi1>, vector<1x4x256xf32>
    %38 = math.log %0 : vector<1x4x256xf32>
    %cst_6 = arith.constant -1.000000e+02 : f32
    %39 = vector.broadcast %cst_6 : f32 to vector<1x4x256xf32>
    %40 = arith.maximumf %38, %39 : vector<1x4x256xf32>
    %cst_7 = arith.constant 1.000000e+00 : f32
    %41 = vector.broadcast %cst_7 : f32 to vector<1x4x256xf32>
    %42 = arith.subf %41, %0 : vector<1x4x256xf32>
    %43 = math.log %42 : vector<1x4x256xf32>
    %cst_8 = arith.constant -1.000000e+02 : f32
    %44 = vector.broadcast %cst_8 : f32 to vector<1x4x256xf32>
    %45 = arith.maximumf %43, %44 : vector<1x4x256xf32>
    %46 = arith.mulf %1, %40 : vector<1x4x256xf32>
    %cst_9 = arith.constant 1.000000e+00 : f32
    %47 = vector.broadcast %cst_9 : f32 to vector<1x4x256xf32>
    %48 = arith.subf %47, %1 : vector<1x4x256xf32>
    %49 = arith.mulf %48, %45 : vector<1x4x256xf32>
    %50 = arith.addf %46, %49 : vector<1x4x256xf32>
    %cst_10 = arith.constant 0.000000e+00 : f32
    %51 = vector.broadcast %cst_10 : f32 to vector<1x4x256xf32>
    %52 = arith.subf %51, %50 : vector<1x4x256xf32>
    %cst_11 = arith.constant 2.550000e+02 : f32
    %53 = vector.broadcast %cst_11 : f32 to vector<1x4x256xf32>
    %54 = arith.cmpf one, %1, %53 : vector<1x4x256xf32>
    %cst_12 = arith.constant 0x7F800000 : f32
    %55 = vector.broadcast %cst_12 : f32 to vector<1x4x256xf32>
    %56 = arith.select %54, %37, %55 : vector<1x4x256xi1>, vector<1x4x256xf32>
    %c0_13 = arith.constant 0 : index
    %c0_14 = arith.constant 0 : index
    %c0_15 = arith.constant 0 : index
    %57 = vector.load %arg4[%c0_13, %c0_14, %c0_15] : memref<1x4x256xf32, #tpu.memory_space<vmem>>, vector<1x4x256xf32>
    tpu.vector_store %arg4[%c0_13, %c0_14, %c0_15], %56 {strides = array<i32>} : memref<1x4x256xf32, #tpu.memory_space<vmem>>, vector<1x4x256xf32>,
    %c0_16 = arith.constant 0 : index
    %c0_17 = arith.constant 0 : index
    %c0_18 = arith.constant 0 : index
    %58 = vector.load %arg5[%c0_16, %c0_17, %c0_18] : memref<1x4x256xf32, #tpu.memory_space<vmem>>, vector<1x4x256xf32>
    tpu.vector_store %arg5[%c0_16, %c0_17, %c0_18], %52 {strides = array<i32>} : memref<1x4x256xf32, #tpu.memory_space<vmem>>, vector<1x4x256xf32>,
    return
  }
  func.func @transform_0(%arg0: i32, %arg1: i32) -> (i32, i32, i32) {
    %c0_i32 = arith.constant 0 : i32
    %c0_i32_0 = arith.constant 0 : i32
    return %arg0, %c0_i32, %arg1 : i32, i32, i32
  }
  func.func @transform_1(%arg0: i32, %arg1: i32) -> (i32, i32, i32) {
    %c0_i32 = arith.constant 0 : i32
    %c0_i32_0 = arith.constant 0 : i32
    return %arg0, %c0_i32, %arg1 : i32, i32, i32
  }
  func.func @transform_2(%arg0: i32, %arg1: i32) -> (i32, i32, i32) {
    %c0_i32 = arith.constant 0 : i32
    %c0_i32_0 = arith.constant 0 : i32
    return %arg0, %c0_i32, %arg1 : i32, i32, i32
  }
  func.func @transform_3(%arg0: i32, %arg1: i32) -> (i32, i32, i32) {
    %c0_i32 = arith.constant 0 : i32
    %c0_i32_0 = arith.constant 0 : i32
    return %arg0, %c0_i32, %arg1 : i32, i32, i32
  }
}

</mosaic_0001>

<llo_original>
// kernel: tpu_custom_call.1
$region0: #{tpu_custom_call.1}
  #allocation0 [shape = 'u32[]', space=smem, size = 0x4, offset = 0x4, fixed_abs, tag = 'smem constant byte address 0x4 - core index']
  #allocation1 [shape = 'u32[144,128]{1,0:T(1,128)}', space=vmem, size = 0x12000, scoped, tag = 'internal scratch']
  %s0 = inlined_call_operand.hbm [shape: f32[2,4,256], index: 0, kind: input, shape index: {}]
  %s1 = inlined_call_operand.hbm [shape: f32[2,4,256], index: 1, kind: input, shape index: {}]
  %s2 = inlined_call_operand.hbm [shape: f32[2,4,256], index: 2, kind: output, shape index: {0}]
  %s3 = inlined_call_operand.hbm [shape: f32[2,4,256], index: 3, kind: output, shape index: {1}]
  %4 = xla_tuple %s2, %s3
  %s5 = sld [smem:[#allocation0]]
  $region57: #{tpu_custom_call.1} parent=0
    _
  %s7 = ssub.s32 1, %s5
  %s8 = scalar_select 0, %s7, %s5
  $region1: #{tpu_custom_call.1} parent=0
    #allocation2 [shape = 'u8[8192]{0}', space=vmem, size = 0x2000, scoped, tag = 'input window, operand 0']
    #allocation3 [shape = 's32[2]{0}', space=sflag, size = 0x8, scoped, tag = 'scoped memory for tpu_custom_call.1']
    #allocation4 [shape = 's32[2]{0}', space=sflag, size = 0x8, scoped, tag = 'scoped memory for tpu_custom_call.1']
    #allocation5 [shape = 'u8[8192]{0}', space=vmem, size = 0x2000, scoped, tag = 'input window, operand 1']
    #allocation6 [shape = 's32[2]{0}', space=sflag, size = 0x8, scoped, tag = 'scoped memory for tpu_custom_call.1']
    #allocation7 [shape = 'u8[8192]{0}', space=vmem, size = 0x2000, scoped, tag = 'output window, operand 0']
    #allocation8 [shape = 'u8[8192]{0}', space=vmem, size = 0x2000, scoped, tag = 'output window, operand 1']
    #allocation9 [shape = 's32[2]{0}', space=sflag, size = 0x8, scoped, tag = 'scoped memory for tpu_custom_call.1']
    %9 = vsyncpa [#allocation3], 0
    %s10 = scalar_lea.sflag [#allocation3], 1
    %11 = vsyncpa %s10, 0
    %12 = vsyncpa [#allocation6], 0
    %s13 = scalar_lea.sflag [#allocation6], 1
    %14 = vsyncpa %s13, 0
    %15 = vsyncpa [#allocation4], 0
    %s16 = scalar_lea.sflag [#allocation4], 1
    %17 = vsyncpa %s16, 0
    %18 = vsyncpa [#allocation9], 0
    %s19 = scalar_lea.sflag [#allocation9], 1
    %20 = vsyncpa %s19, 0
    loop: start=0, step=1, limit=4
    $region2: #{tpu_custom_call.1} parent=1 // loop_pre_header
      _
    $region3: #{tpu_custom_call.1} parent=1 // loop_header
      %s22 = sphi 0, %s26
      %p23 = scmp.ge.s32.totalorder %s22, 4
      %s29 = sphi 0, %s41
      %s30 = sphi 0, %s37
      %s31 = sphi 0, %s29
      %s32 = sphi 0, %s30
      %s33 = sphi 0, %s31
      %s34 = sphi 0, %s32
      %s46 = sphi 0, %s48
      %s49 = sphi 0, %s46
      %s50 = sphi 0, %s49
      %s66 = sphi 0, %s50
      %s74 = sphi 0, %s76
      %s77 = sphi 0, %s74
      %s78 = sphi 0, %s77
      %s94 = sphi 0, %s78
      %s102 = sphi 0, %s104
      %s105 = sphi 0, %s102
      %s106 = sphi 0, %s105
      %s122 = sphi 0, %s106
      %s130 = sphi 0, %s132
      %s133 = sphi 0, %s130
      %s134 = sphi 0, %s133
      %s150 = sphi 0, %s134
    $region4: #{tpu_custom_call.1} parent=1 // loop_header_branch
      %25 = sbr.rel (%p23) target = $region8
    $region5: #{tpu_custom_call.1} parent=1 // loop_body
      %s27 = ssub.s32 %s22, 1
      %s28 = ssub.s32 %s22, 2
      %s35 = sadd.s32 1, %s30
      %p36 = scmp.ge.s32.totalorder %s35, 1
      %s37 = scalar_select %p36, 0, %s35
      %s38 = sadd.s32 1, %s29
      %s39 = scalar_select %p36, %s38, %s29
      %p40 = scmp.ge.s32.totalorder %s39, 2
      %s41 = scalar_select %p40, 0, %s39
      %s42 = ssub.s32 %s29, %s41
      %s43 = ssub.s32 %s30, %s37
      %s44 = sor.u32 %s42, %s43
      %p45 = scmp.eq.s32.totalorder %s44, 0
      %s47 = sadd.s32 %s46, 1
      %s48 = scalar_select %p45, %s46, %s47
      %p51 = pneg %p45
      %p52 = scmp.eq.s32.totalorder %s22, 1
      %p53 = por %p51, %p52
      %p54 = scmp.ne.s32.totalorder %s46, %s49
      %p55 = scmp.eq.s32.totalorder %s22, 0
      %p56 = por %p54, %p55
      %p57 = scmp.ne.s32.totalorder %s46, %s49
      %p58 = scmp.eq.s32.totalorder %s27, 1
      %p59 = por %p57, %p58
      %p60 = scmp.ne.s32.totalorder %s49, %s50
      %p61 = scmp.eq.s32.totalorder %s27, 0
      %p62 = por %p60, %p61
      %p63 = scmp.ne.s32.totalorder %s49, %s50
      %p64 = scmp.eq.s32.totalorder %s28, 1
      %p65 = por %p63, %p64
      %p67 = scmp.ne.s32.totalorder %s50, %s66
      %p68 = scmp.eq.s32.totalorder %s28, 0
      %p69 = por %p67, %p68
      %s70 = ssub.s32 %s29, %s41
      %s71 = ssub.s32 %s30, %s37
      %s72 = sor.u32 %s70, %s71
      %p73 = scmp.eq.s32.totalorder %s72, 0
      %s75 = sadd.s32 %s74, 1
      %s76 = scalar_select %p73, %s74, %s75
      %p79 = pneg %p73
      %p80 = scmp.eq.s32.totalorder %s22, 1
      %p81 = por %p79, %p80
      %p82 = scmp.ne.s32.totalorder %s74, %s77
      %p83 = scmp.eq.s32.totalorder %s22, 0
      %p84 = por %p82, %p83
      %p85 = scmp.ne.s32.totalorder %s74, %s77
      %p86 = scmp.eq.s32.totalorder %s27, 1
      %p87 = por %p85, %p86
      %p88 = scmp.ne.s32.totalorder %s77, %s78
      %p89 = scmp.eq.s32.totalorder %s27, 0
      %p90 = por %p88, %p89
      %p91 = scmp.ne.s32.totalorder %s77, %s78
      %p92 = scmp.eq.s32.totalorder %s28, 1
      %p93 = por %p91, %p92
      %p95 = scmp.ne.s32.totalorder %s78, %s94
      %p96 = scmp.eq.s32.totalorder %s28, 0
      %p97 = por %p95, %p96
      %s98 = ssub.s32 %s29, %s41
      %s99 = ssub.s32 %s30, %s37
      %s100 = sor.u32 %s98, %s99
      %p101 = scmp.eq.s32.totalorder %s100, 0
      %s103 = sadd.s32 %s102, 1
      %s104 = scalar_select %p101, %s102, %s103
      %p107 = pneg %p101
      %p108 = scmp.eq.s32.totalorder %s22, 1
      %p109 = por %p107, %p108
      %p110 = scmp.ne.s32.totalorder %s102, %s105
      %p111 = scmp.eq.s32.totalorder %s22, 0
      %p112 = por %p110, %p111
      %p113 = scmp.ne.s32.totalorder %s102, %s105
      %p114 = scmp.eq.s32.totalorder %s27, 1
      %p115 = por %p113, %p114
      %p116 = scmp.ne.s32.totalorder %s105, %s106
      %p117 = scmp.eq.s32.totalorder %s27, 0
      %p118 = por %p116, %p117
      %p119 = scmp.ne.s32.totalorder %s105, %s106
      %p120 = scmp.eq.s32.totalorder %s28, 1
      %p121 = por %p119, %p120
      %p123 = scmp.ne.s32.totalorder %s106, %s122
      %p124 = scmp.eq.s32.totalorder %s28, 0
      %p125 = por %p123, %p124
      %s126 = ssub.s32 %s29, %s41
      %s127 = ssub.s32 %s30, %s37
      %s128 = sor.u32 %s126, %s127
      %p129 = scmp.eq.s32.totalorder %s128, 0
      %s131 = sadd.s32 %s130, 1
      %s132 = scalar_select %p129, %s130, %s131
      %p135 = pneg %p129
      %p136 = scmp.eq.s32.totalorder %s22, 1
      %p137 = por %p135, %p136
      %p138 = scmp.ne.s32.totalorder %s130, %s133
      %p139 = scmp.eq.s32.totalorder %s22, 0
      %p140 = por %p138, %p139
      %p141 = scmp.ne.s32.totalorder %s130, %s133
      %p142 = scmp.eq.s32.totalorder %s27, 1
      %p143 = por %p141, %p142
      %p144 = scmp.ne.s32.totalorder %s133, %s134
      %p145 = scmp.eq.s32.totalorder %s27, 0
      %p146 = por %p144, %p145
      %p147 = scmp.ne.s32.totalorder %s133, %s134
      %p148 = scmp.eq.s32.totalorder %s28, 1
      %p149 = por %p147, %p148
      %p151 = scmp.ne.s32.totalorder %s134, %s150
      %p152 = scmp.eq.s32.totalorder %s28, 0
      %p153 = por %p151, %p152
      %p154 = scmp.le.s32.totalorder 1, %s22
      %p155 = scmp.lt.s32.totalorder %s22, 3
      %p156 = pnand %p154, %p155
      %p157 = pneg %p156
      // Predicated region
      $region9: #{tpu_custom_call.1} parent=5 // pred_check
        _
      $region10: #{tpu_custom_call.1} parent=5 // pred_check_branch
        %159 = sbr.rel (%p156) target = $region12
      $region11: #{tpu_custom_call.1} parent=5 // pred_region
        %s160 = ssub.s32 %s22, 1
      $region12: #{tpu_custom_call.1} parent=5 // pred_fallthru
        _
      %p161 = scmp.lt.s32.totalorder %s22, 2
      // Predicated region
      $region13: #{tpu_custom_call.1} parent=5 // pred_check
        %p162 = pneg %p161
      $region14: #{tpu_custom_call.1} parent=5 // pred_check_branch
        %164 = sbr.rel (%p162) target = $region16
      $region15: #{tpu_custom_call.1} parent=5 // pred_region
        // Predicated region
        $region17: #{tpu_custom_call.1} parent=15 // pred_check
          %p165 = pneg %p56
        $region18: #{tpu_custom_call.1} parent=15 // pred_check_branch
          %167 = sbr.rel (%p165) target = $region20
        $region19: #{tpu_custom_call.1} parent=15 // pred_region
          %s168 = sand.u32 %s46, 1
          %s169 = scalar_lea.sflag [#allocation3], %s168
          %s170 = sand.u32 %s46, 1
          %s171 = smul.addr %s170, 8
          %s172 = scalar_lea.vmem [#allocation2], %s171
          %s173 = smul.u32 2, %s30
          %s175 = ssub.s32 128, 128
          %176 = vsyncadd %s169, %s175
          %s177 = smul.addr %s29, 2
          %s178 = sadd.s32 %s173, %s177
          %s179 = smul.addr %s178, 64
          %s180 = scalar_lea.hbm %s0, %s179
          %s182 = sshll.u32 %s172, 4
          %s183 = int_to_ptr.vmem [resolvable:$true] %s182
          %185 = dma.hbm_to_vmem [thread:$0]  %s180, 128, %s183, %s169
        $region20: #{tpu_custom_call.1} parent=15 // pred_fallthru
          _
        // Predicated region
        $region21: #{tpu_custom_call.1} parent=15 // pred_check
          %p186 = pneg %p84
        $region22: #{tpu_custom_call.1} parent=15 // pred_check_branch
          %188 = sbr.rel (%p186) target = $region24
        $region23: #{tpu_custom_call.1} parent=15 // pred_region
          %s189 = sand.u32 %s74, 1
          %s190 = scalar_lea.sflag [#allocation6], %s189
          %s191 = sand.u32 %s74, 1
          %s192 = smul.addr %s191, 8
          %s193 = scalar_lea.vmem [#allocation5], %s192
          %s194 = smul.u32 2, %s30
          %s196 = ssub.s32 128, 128
          %197 = vsyncadd %s190, %s196
          %s198 = smul.addr %s29, 2
          %s199 = sadd.s32 %s194, %s198
          %s200 = smul.addr %s199, 64
          %s201 = scalar_lea.hbm %s1, %s200
          %s203 = sshll.u32 %s193, 4
          %s204 = int_to_ptr.vmem [resolvable:$true] %s203
          %206 = dma.hbm_to_vmem [thread:$0]  %s201, 128, %s204, %s190
        $region24: #{tpu_custom_call.1} parent=15 // pred_fallthru
          _
      $region16: #{tpu_custom_call.1} parent=5 // pred_fallthru
        _
      %p207 = scmp.le.s32.totalorder 1, %s22
      %p208 = scmp.lt.s32.totalorder %s22, 3
      %p209 = pnand %p207, %p208
      %p210 = pneg %p209
      // Predicated region
      $region25: #{tpu_custom_call.1} parent=5 // pred_check
        _
      $region26: #{tpu_custom_call.1} parent=5 // pred_check_branch
        %212 = sbr.rel (%p209) target = $region28
      $region27: #{tpu_custom_call.1} parent=5 // pred_region
        %s213 = ssub.s32 %s22, 1
        %s214 = sand.u32 %s49, 1
        %s215 = scalar_lea.sflag [#allocation3], %s214
        %s216 = sand.u32 %s49, 1
        %s217 = smul.addr %s216, 8
        %s218 = scalar_lea.vmem [#allocation2], %s217
        // Predicated region
        $region29: #{tpu_custom_call.1} parent=27 // pred_check
          %p219 = pneg %p62
        $region30: #{tpu_custom_call.1} parent=27 // pred_check_branch
          %221 = sbr.rel (%p219) target = $region32
        $region31: #{tpu_custom_call.1} parent=27 // pred_region
          %222 = dma.done %s215, 128
        $region32: #{tpu_custom_call.1} parent=27 // pred_fallthru
          _
        %s223 = sand.u32 %s77, 1
        %s224 = scalar_lea.sflag [#allocation6], %s223
        %s225 = sand.u32 %s77, 1
        %s226 = smul.addr %s225, 8
        %s227 = scalar_lea.vmem [#allocation5], %s226
        // Predicated region
        $region33: #{tpu_custom_call.1} parent=27 // pred_check
          %p228 = pneg %p90
        $region34: #{tpu_custom_call.1} parent=27 // pred_check_branch
          %230 = sbr.rel (%p228) target = $region36
        $region35: #{tpu_custom_call.1} parent=27 // pred_region
          %231 = dma.done %s224, 128
        $region36: #{tpu_custom_call.1} parent=27 // pred_fallthru
          _
        %s232 = sand.u32 %s49, 1
        %s233 = scalar_lea.sflag [#allocation3], %s232
        %s234 = sand.u32 %s49, 1
        %s235 = smul.addr %s234, 8
        %s236 = scalar_lea.vmem [#allocation2], %s235
        %p237 = pneg %p62
        %p238 = pneg %p59
        %s239 = sand.u32 %s77, 1
        %s240 = scalar_lea.sflag [#allocation6], %s239
        %s241 = sand.u32 %s77, 1
        %s242 = smul.addr %s241, 8
        %s243 = scalar_lea.vmem [#allocation5], %s242
        %p244 = pneg %p90
        %p245 = pneg %p87
        %p246 = pneg %p118
        %p247 = pneg %p115
        %s248 = sand.u32 %s105, 1
        %s249 = scalar_lea.sflag [#allocation4], %s248
        %s250 = sand.u32 %s105, 1
        %s251 = smul.addr %s250, 8
        %s252 = scalar_lea.vmem [#allocation7], %s251
        %p253 = pneg %p146
        %p254 = pneg %p143
        %s255 = sand.u32 %s133, 1
        %s256 = scalar_lea.sflag [#allocation9], %s255
        %s257 = sand.u32 %s133, 1
        %s258 = smul.addr %s257, 8
        %s259 = scalar_lea.vmem [#allocation8], %s258
        %s260 = smul.u32 2, %s32
        %s261 = smul.u32 2, %s32
        %s262 = smul.u32 2, %s32
        %s263 = smul.u32 2, %s32
        %v264 = vld [vmem:[%s218] sm:$0xff]
        %v265 = vld [vmem:[%s227] sm:$0xff]
        %v267 = vcombine.high %v264, %v264
        %vm269 = vcmask 1043456
        %v270 = vsel %vm269, %v264, -inf
        %v271 = vrot.slane %v270, 4
        %v272 = vmax.f32 %v270, %v271
        %v273 = vrot.slane %v272, 2
        %v274 = vmax.f32 %v272, %v273
        %v275 = vrot.slane %v274, 1
        %v276 = vmax.f32 %v274, %v275
        %v277 = vsel %vm269, %v267, -inf
        %v278 = vrot.slane %v277, 4
        %v279 = vmax.f32 %v277, %v278
        %v280 = vrot.slane %v279, 2
        %v281 = vmax.f32 %v279, %v280
        %v282 = vrot.slane %v281, 1
        %v283 = vmax.f32 %v281, %v282
        %v286 = vcombine.low %v276, %v283
        %v288 = vsub.f32 %v264, %v286
        %v289 = vmul.f32 %v288, 1.442695
        %v290 = vpow.pop %v289
        %v292 = vcombine.high %v290, %v290
        %v294 = vsel %vm269, %v290, 0.0
        %v295 = vrot.slane %v294, 4
        %v296 = vadd.f32 %v294, %v295
        %v297 = vrot.slane %v296, 2
        %v298 = vadd.f32 %v296, %v297
        %v299 = vrot.slane %v298, 1
        %v300 = vadd.f32 %v298, %v299
        %v301 = vsel %vm269, %v292, 0.0
        %v302 = vrot.slane %v301, 4
        %v303 = vadd.f32 %v301, %v302
        %v304 = vrot.slane %v303, 2
        %v305 = vadd.f32 %v303, %v304
        %v306 = vrot.slane %v305, 1
        %v307 = vadd.f32 %v305, %v306
        %v308 = vrcp.pop %v300
        %v309 = vrcp.pop %v307
        %v312 = vcombine.low %v308, %v309
        %v314 = vmul.f32 %v290, %v312
        %v315 = vcvt.f32.s32.to.zero.pseudo %v265
        %vm316 = vcmp.eq.s32.totalorder %v315, 255
        %v317 = vsel %vm316, 0, %v315
        %v319 = vlaneseq
        %v320 = vshrl.u32 %v319, 7
        %v321 = vsub.s32 0, %v320
        %v322 = vrot.slane %v314, %v321
        %v323 = vlaneseq
        %v324 = vshrl.u32 %v323, 7
        %v325 = vsub.s32 4, %v324
        %v326 = vrot.slane %v314, %v325
        %v329 = vlaneseq
        %v330 = vshrl.u32 %v329, 7
        %v331 = vsub.s32 0, %v330
        %v332 = vrot.slane %v322, %v331
        %v333 = vlaneseq
        %v334 = vshrl.u32 %v333, 7
        %v335 = vsub.s32 0, %v334
        %v336 = vrot.slane %v326, %v335
        %vm337 = vcmp.eq.s32.totalorder %v317, 1
        %v338 = vlaneseq
        %v339 = vshrl.u32 %v338, 7
        %v340 = vsub.s32 1, %v339
        %v341 = vrot.slane %v314, %v340
        %v342 = vlaneseq
        %v343 = vshrl.u32 %v342, 7
        %v344 = vsub.s32 5, %v343
        %v345 = vrot.slane %v314, %v344
        %v348 = vlaneseq
        %v349 = vshrl.u32 %v348, 7
        %v350 = vsub.s32 1, %v349
        %v351 = vrot.slane %v341, %v350
        %v352 = vlaneseq
        %v353 = vshrl.u32 %v352, 7
        %v354 = vsub.s32 1, %v353
        %v355 = vrot.slane %v345, %v354
        %v358 = vcombine.low %v351, %v355
        %v362 = vcombine.low %v332, %v336
        %v364 = vsel %vm337, %v358, %v362
        %vm365 = vcmp.eq.s32.totalorder %v317, 2
        %v366 = vlaneseq
        %v367 = vshrl.u32 %v366, 7
        %v368 = vsub.s32 2, %v367
        %v369 = vrot.slane %v314, %v368
        %v370 = vlaneseq
        %v371 = vshrl.u32 %v370, 7
        %v372 = vsub.s32 6, %v371
        %v373 = vrot.slane %v314, %v372
        %v376 = vlaneseq
        %v377 = vshrl.u32 %v376, 7
        %v378 = vsub.s32 2, %v377
        %v379 = vrot.slane %v369, %v378
        %v380 = vlaneseq
        %v381 = vshrl.u32 %v380, 7
        %v382 = vsub.s32 2, %v381
        %v383 = vrot.slane %v373, %v382
        %v386 = vcombine.low %v379, %v383
        %v388 = vsel %vm365, %v386, %v364
        %vm389 = vcmp.eq.s32.totalorder %v317, 3
        %v390 = vlaneseq
        %v391 = vshrl.u32 %v390, 7
        %v392 = vsub.s32 3, %v391
        %v393 = vrot.slane %v314, %v392
        %v394 = vlaneseq
        %v395 = vshrl.u32 %v394, 7
        %v396 = vsub.s32 7, %v395
        %v397 = vrot.slane %v314, %v396
        %v400 = vlaneseq
        %v401 = vshrl.u32 %v400, 7
        %v402 = vsub.s32 3, %v401
        %v403 = vrot.slane %v393, %v402
        %v404 = vlaneseq
        %v405 = vshrl.u32 %v404, 7
        %v406 = vsub.s32 3, %v405
        %v407 = vrot.slane %v397, %v406
        %v410 = vcombine.low %v403, %v407
        %v412 = vsel %vm389, %v410, %v388
        %v413 = vlog2.pop %v264
        %v414 = vmul.f32 %v413, 0.6931472
        %v415 = vmax.f32 %v414, -100.0
        %v416 = vsub.f32 1.0, %v264
        %v417 = vlog2.pop %v416
        %v418 = vmul.f32 %v417, 0.6931472
        %v419 = vmax.f32 %v418, -100.0
        %v420 = vmul.f32 %v265, %v415
        %v421 = vsub.f32 1.0, %v265
        %v422 = vmul.f32 %v421, %v419
        %v423 = vadd.f32 %v420, %v422
        %v424 = vsub.f32 0.0, %v423
        %vm425 = vcmp.ne.f32.partialorder %v265, 255.0
        %v426 = vsel %vm425, %v412, inf
        %427 = vst [vmem:[%s252] sm:$0xff] %v426
        %428 = vst [vmem:[%s259] sm:$0xff] %v424
        %s429 = sand.u32 %s105, 1
        %s430 = scalar_lea.sflag [#allocation4], %s429
        %s431 = sand.u32 %s105, 1
        %s432 = smul.addr %s431, 8
        %s433 = scalar_lea.vmem [#allocation7], %s432
        %s434 = sand.u32 %s133, 1
        %s435 = scalar_lea.sflag [#allocation9], %s434
        %s436 = sand.u32 %s133, 1
        %s437 = smul.addr %s436, 8
        %s438 = scalar_lea.vmem [#allocation8], %s437
        // Predicated region
        $region37: #{tpu_custom_call.1} parent=27 // pred_check
          %p439 = pneg %p115
        $region38: #{tpu_custom_call.1} parent=27 // pred_check_branch
          %441 = sbr.rel (%p439) target = $region40
        $region39: #{tpu_custom_call.1} parent=27 // pred_region
          %s442 = smul.u32 2, %s32
          %s444 = ssub.s32 128, 128
          %445 = vsyncadd %s430, %s444
          %s446 = smul.addr %s31, 2
          %s447 = sadd.s32 %s442, %s446
          %s448 = smul.addr %s447, 64
          %s449 = scalar_lea.hbm %s2, %s448
          %s451 = sshll.u32 %s433, 4
          %s452 = int_to_ptr.vmem [resolvable:$true] %s451
          %454 = dma.vmem_to_hbm [thread:$0]  %s452, 128, %s449, %s430
        $region40: #{tpu_custom_call.1} parent=27 // pred_fallthru
          _
        // Predicated region
        $region41: #{tpu_custom_call.1} parent=27 // pred_check
          %p455 = pneg %p143
        $region42: #{tpu_custom_call.1} parent=27 // pred_check_branch
          %457 = sbr.rel (%p455) target = $region44
        $region43: #{tpu_custom_call.1} parent=27 // pred_region
          %s458 = smul.u32 2, %s32
          %s460 = ssub.s32 128, 128
          %461 = vsyncadd %s435, %s460
          %s462 = smul.addr %s31, 2
          %s463 = sadd.s32 %s458, %s462
          %s464 = smul.addr %s463, 64
          %s465 = scalar_lea.hbm %s3, %s464
          %s467 = sshll.u32 %s438, 4
          %s468 = int_to_ptr.vmem [resolvable:$true] %s467
          %470 = dma.vmem_to_hbm [thread:$0]  %s468, 128, %s465, %s435
        $region44: #{tpu_custom_call.1} parent=27 // pred_fallthru
          _
      $region28: #{tpu_custom_call.1} parent=5 // pred_fallthru
        _
      %p471 = scmp.le.s32.totalorder 2, %s22
      // Predicated region
      $region45: #{tpu_custom_call.1} parent=5 // pred_check
        %p472 = pneg %p471
      $region46: #{tpu_custom_call.1} parent=5 // pred_check_branch
        %474 = sbr.rel (%p472) target = $region48
      $region47: #{tpu_custom_call.1} parent=5 // pred_region
        %s475 = ssub.s32 %s22, 2
        // Predicated region
        $region49: #{tpu_custom_call.1} parent=47 // pred_check
          %p476 = pneg %p121
        $region50: #{tpu_custom_call.1} parent=47 // pred_check_branch
          %478 = sbr.rel (%p476) target = $region52
        $region51: #{tpu_custom_call.1} parent=47 // pred_region
          %s479 = sand.u32 %s106, 1
          %s480 = scalar_lea.sflag [#allocation4], %s479
          %s481 = sand.u32 %s106, 1
          %s482 = smul.addr %s481, 8
          %s483 = scalar_lea.vmem [#allocation7], %s482
          %484 = dma.done %s480, 128
        $region52: #{tpu_custom_call.1} parent=47 // pred_fallthru
          _
        // Predicated region
        $region53: #{tpu_custom_call.1} parent=47 // pred_check
          %p485 = pneg %p149
        $region54: #{tpu_custom_call.1} parent=47 // pred_check_branch
          %487 = sbr.rel (%p485) target = $region56
        $region55: #{tpu_custom_call.1} parent=47 // pred_region
          %s488 = sand.u32 %s134, 1
          %s489 = scalar_lea.sflag [#allocation9], %s488
          %s490 = sand.u32 %s134, 1
          %s491 = smul.addr %s490, 8
          %s492 = scalar_lea.vmem [#allocation8], %s491
          %493 = dma.done %s489, 128
        $region56: #{tpu_custom_call.1} parent=47 // pred_fallthru
          _
      $region48: #{tpu_custom_call.1} parent=5 // pred_fallthru
        _
    $region6: #{tpu_custom_call.1} parent=1 // loop_footer
      %s26 = sadd.s32 1, %s22
    $region7: #{tpu_custom_call.1} parent=1 // loop_footer_branch
      %21 = sbr.rel target = $region3
    $region8: #{tpu_custom_call.1} parent=1 // loop_exit
      _
    %494 = vsyncpa [#allocation3], 1
    %s495 = scalar_lea.sflag [#allocation3], 1
    %496 = vsyncpa %s495, 1
    %497 = vsyncpa [#allocation6], 1
    %s498 = scalar_lea.sflag [#allocation6], 1
    %499 = vsyncpa %s498, 1
    %500 = vsyncpa [#allocation4], 1
    %s501 = scalar_lea.sflag [#allocation4], 1
    %502 = vsyncpa %s501, 1
    %503 = vsyncpa [#allocation9], 1
    %s504 = scalar_lea.sflag [#allocation9], 1
    %505 = vsyncpa %s504, 1

</llo_original>
